<compile_context>
chip_gen: v7x
topology: tpu7x:2x2x1
jax: 0.10.0
libtpu: 0.0.40
codegen_flags: <defaults>
</compile_context>

<pallas_src>
import jax
import jax.numpy as jnp
from jax.experimental import pallas as pl
from jax.experimental.pallas import tpu as pltpu

LATENT = 100
LATENT_PAD = 128          # 100 -> 128 (lane-aligned K for layer 1)
HID = 256
OUT = 28 * 28             # 784
OUT_PAD = 896             # 784 -> 7 * 128 (lane-dense output stores)
TM_MAX = 256              # batch tile (multiple of 8; fills MXU rows)


def generator_kernel(x_ref, w1_ref, b1_ref, w2_ref, b2_ref, w3_ref, b3_ref,
                     o_ref):
    # x_ref: (TM, 128) bf16.  Weights: bf16.  Biases: f32.  Output: f32.
    x = x_ref[...]

    # Layer 1: Linear(128 -> 256) + ReLU  (bf16 MXU matmul, f32 accumulate)
    h1 = jnp.dot(x, w1_ref[...], preferred_element_type=jnp.float32)
    h1 = jnp.maximum(h1 + b1_ref[...], 0.0)

    # Layer 2: Linear(256 -> 256) + ReLU
    h2 = jnp.dot(h1.astype(jnp.bfloat16), w2_ref[...],
                 preferred_element_type=jnp.float32)
    h2 = jnp.maximum(h2 + b2_ref[...], 0.0)

    # Layer 3: Linear(256 -> 896[padded]) + Tanh  (tanh on the EUP, f32)
    h3 = jnp.dot(h2.astype(jnp.bfloat16), w3_ref[...],
                 preferred_element_type=jnp.float32)
    o_ref[...] = jnp.tanh(h3 + b3_ref[...])


def _pad_to(arr, shape):
    return jnp.pad(arr, [(0, s - d) for d, s in zip(arr.shape, shape)])


def _prepare_params(params):
    """Pad to lane-aligned shapes; weights -> bf16, biases stay f32."""
    w1, b1, w2, b2, w3, b3 = params
    w1p = _pad_to(w1, (LATENT_PAD, HID)).astype(jnp.bfloat16)   # (128, 256)
    w2p = w2.astype(jnp.bfloat16)                               # (256, 256)
    w3p = _pad_to(w3, (HID, OUT_PAD)).astype(jnp.bfloat16)      # (256, 896)
    b1p = b1.astype(jnp.float32)                                # (1, 256)
    b2p = b2.astype(jnp.float32)                                # (1, 256)
    b3p = _pad_to(b3, (1, OUT_PAD)).astype(jnp.float32)         # (1, 896)
    return w1p, b1p, w2p, b2p, w3p, b3p


@jax.jit
def generator_forward(x, params):
    """x: (B, 100) float32 -> imgs: (B, 28, 28, 1) float32."""
    w1, b1, w2, b2, w3, b3 = _prepare_params(params)

    B = x.shape[0]
    # Batch tile: multiple of 8, capped at TM_MAX.
    tm = min(TM_MAX, max(8, ((B + 7) // 8) * 8))
    grid_m = pl.cdiv(B, tm)
    Bp = grid_m * tm

    # Zero-pad latent 100 -> 128 and batch B -> Bp; feed bf16 to the MXU.
    xp = _pad_to(x, (Bp, LATENT_PAD)).astype(jnp.bfloat16)

    out = pl.pallas_call(
        generator_kernel,
        out_shape=jax.ShapeDtypeStruct((Bp, OUT_PAD), jnp.float32),
        grid_spec=pltpu.PrefetchScalarGridSpec(
            num_scalar_prefetch=0,
            grid=(grid_m,),
            in_specs=[
                pl.BlockSpec((tm, LATENT_PAD), lambda i: (i, 0)),   # x
                pl.BlockSpec((LATENT_PAD, HID), lambda i: (0, 0)),  # w1
                pl.BlockSpec((1, HID), lambda i: (0, 0)),           # b1
                pl.BlockSpec((HID, HID), lambda i: (0, 0)),         # w2
                pl.BlockSpec((1, HID), lambda i: (0, 0)),           # b2
                pl.BlockSpec((HID, OUT_PAD), lambda i: (0, 0)),     # w3
                pl.BlockSpec((1, OUT_PAD), lambda i: (0, 0)),       # b3
            ],
            out_specs=pl.BlockSpec((tm, OUT_PAD), lambda i: (i, 0)),
        ),
        compiler_params=pltpu.CompilerParams(
            dimension_semantics=("parallel",)),
    )(xp, w1, b1, w2, b2, w3, b3)

    # Drop batch/lane padding, then match PyTorch: imgs.view(-1, 28, 28, 1)
    return out[:B, :OUT].reshape(-1, 28, 28, 1)


def init_params(key):
    """Deterministic f32 parameter init (nn.Linear shapes, (in, out) layout)."""
    k1, k2, k3, k4, k5, k6 = jax.random.split(key, 6)
    w1 = jax.random.normal(k1, (LATENT, HID), jnp.float32) * (1.0 / LATENT) ** 0.5
    b1 = jax.random.normal(k2, (1, HID), jnp.float32) * 0.01
    w2 = jax.random.normal(k3, (HID, HID), jnp.float32) * (1.0 / HID) ** 0.5
    b2 = jax.random.normal(k4, (1, HID), jnp.float32) * 0.01
    w3 = jax.random.normal(k5, (HID, OUT), jnp.float32) * (1.0 / HID) ** 0.5
    b3 = jax.random.normal(k6, (1, OUT), jnp.float32) * 0.01
    return (w1, b1, w2, b2, w3, b3)


def _reference_forward(x, params):
    """Pure-JAX reference mirroring the kernel's bf16-matmul / f32-epilogue."""
    w1, b1, w2, b2, w3, b3 = params
    xb = x.astype(jnp.bfloat16)
    h = jnp.dot(xb, w1.astype(jnp.bfloat16),
                preferred_element_type=jnp.float32) + b1
    h = jnp.maximum(h, 0.0)
    h = jnp.dot(h.astype(jnp.bfloat16), w2.astype(jnp.bfloat16),
                preferred_element_type=jnp.float32) + b2
    h = jnp.maximum(h, 0.0)
    h = jnp.dot(h.astype(jnp.bfloat16), w3.astype(jnp.bfloat16),
                preferred_element_type=jnp.float32) + b3
    return jnp.tanh(h).reshape(-1, 28, 28, 1)


if __name__ == "__main__":
    key = jax.random.PRNGKey(0)
    pkey, xkey = jax.random.split(key)

    params = init_params(pkey)
    B = 8  # small batch of latent vectors z ~ (B, 100)
    x = jax.random.normal(xkey, (B, 100), jnp.float32)

    imgs = generator_forward(x, params)
    imgs = jax.block_until_ready(imgs)

    assert imgs.shape == (B, 28, 28, 1), imgs.shape
    assert imgs.dtype == jnp.float32

    ref = _reference_forward(x, params)
    max_err = float(jnp.max(jnp.abs(imgs - ref)))
    assert jnp.allclose(imgs, ref, atol=1e-2, rtol=1e-2), max_err

    print("KERNEL_OK")
</pallas_src>

<mosaic_0001>
module attributes {stable_mosaic.version = 11 : i64} {
  func.func @generator_kernel(%arg0: i32, %arg1: memref<8x128xbf16, #tpu.memory_space<vmem>>, %arg2: memref<128x256xbf16, #tpu.memory_space<vmem>>, %arg3: memref<1x256xf32, #tpu.memory_space<vmem>>, %arg4: memref<256x256xbf16, #tpu.memory_space<vmem>>, %arg5: memref<1x256xf32, #tpu.memory_space<vmem>>, %arg6: memref<256x896xbf16, #tpu.memory_space<vmem>>, %arg7: memref<1x896xf32, #tpu.memory_space<vmem>>, %arg8: memref<8x896xf32, #tpu.memory_space<vmem>>) attributes {dimension_semantics = [#tpu.dimension_semantics<parallel>], iteration_bounds = array<i64: 1>, scalar_prefetch = 0 : i64, scratch_operands = 0 : i64, tpu.core_type = #tpu.core_type<tc>, window_params = [{transform_indices = @transform_0, window_bounds = array<i64: 8, 128>}, {pipeline_mode = #tpu.pipeline_mode<synchronous>, transform_indices = @transform_1, window_bounds = array<i64: 128, 256>}, {pipeline_mode = #tpu.pipeline_mode<synchronous>, transform_indices = @transform_2, window_bounds = array<i64: 1, 256>}, {pipeline_mode = #tpu.pipeline_mode<synchronous>, transform_indices = @transform_3, window_bounds = array<i64: 256, 256>}, {pipeline_mode = #tpu.pipeline_mode<synchronous>, transform_indices = @transform_4, window_bounds = array<i64: 1, 256>}, {pipeline_mode = #tpu.pipeline_mode<synchronous>, transform_indices = @transform_5, window_bounds = array<i64: 256, 896>}, {pipeline_mode = #tpu.pipeline_mode<synchronous>, transform_indices = @transform_6, window_bounds = array<i64: 1, 896>}, {transform_indices = @transform_7, window_bounds = array<i64: 8, 896>}]} {
    %c0 = arith.constant 0 : index
    %c0_0 = arith.constant 0 : index
    %0 = vector.load %arg1[%c0, %c0_0] : memref<8x128xbf16, #tpu.memory_space<vmem>>, vector<8x128xbf16>
    %c0_1 = arith.constant 0 : index
    %c0_2 = arith.constant 0 : index
    %1 = vector.load %arg2[%c0_1, %c0_2] : memref<128x256xbf16, #tpu.memory_space<vmem>>, vector<128x256xbf16>
    %cst = arith.constant dense<0.000000e+00> : vector<8x256xf32>
    %2 = tpu.matmul %0, %1, %cst {dimension_numbers = #tpu.dot_dimension_numbers<[1], [0], [0], [1], [0, 0, 1, 1], [], []>} : vector<8x128xbf16>, vector<128x256xbf16>, vector<8x256xf32> -> vector<8x256xf32>
    %c0_3 = arith.constant 0 : index
    %c0_4 = arith.constant 0 : index
    %3 = vector.load %arg3[%c0_3, %c0_4] : memref<1x256xf32, #tpu.memory_space<vmem>>, vector<1x256xf32>
    %4 = vector.broadcast %3 : vector<1x256xf32> to vector<8x256xf32>
    %5 = arith.addf %2, %4 : vector<8x256xf32>
    %cst_5 = arith.constant 0.000000e+00 : f32
    %6 = vector.broadcast %cst_5 : f32 to vector<8x256xf32>
    %7 = arith.maximumf %5, %6 : vector<8x256xf32>
    %8 = arith.truncf %7 : vector<8x256xf32> to vector<8x256xbf16>
    %c0_6 = arith.constant 0 : index
    %c0_7 = arith.constant 0 : index
    %9 = vector.load %arg4[%c0_6, %c0_7] : memref<256x256xbf16, #tpu.memory_space<vmem>>, vector<256x256xbf16>
    %cst_8 = arith.constant dense<0.000000e+00> : vector<8x256xf32>
    %10 = tpu.matmul %8, %9, %cst_8 {dimension_numbers = #tpu.dot_dimension_numbers<[1], [0], [0], [1], [0, 0, 1, 1], [], []>} : vector<8x256xbf16>, vector<256x256xbf16>, vector<8x256xf32> -> vector<8x256xf32>
    %c0_9 = arith.constant 0 : index
    %c0_10 = arith.constant 0 : index
    %11 = vector.load %arg5[%c0_9, %c0_10] : memref<1x256xf32, #tpu.memory_space<vmem>>, vector<1x256xf32>
    %12 = vector.broadcast %11 : vector<1x256xf32> to vector<8x256xf32>
    %13 = arith.addf %10, %12 : vector<8x256xf32>
    %cst_11 = arith.constant 0.000000e+00 : f32
    %14 = vector.broadcast %cst_11 : f32 to vector<8x256xf32>
    %15 = arith.maximumf %13, %14 : vector<8x256xf32>
    %16 = arith.truncf %15 : vector<8x256xf32> to vector<8x256xbf16>
    %c0_12 = arith.constant 0 : index
    %c0_13 = arith.constant 0 : index
    %17 = vector.load %arg6[%c0_12, %c0_13] : memref<256x896xbf16, #tpu.memory_space<vmem>>, vector<256x896xbf16>
    %cst_14 = arith.constant dense<0.000000e+00> : vector<8x896xf32>
    %18 = tpu.matmul %16, %17, %cst_14 {dimension_numbers = #tpu.dot_dimension_numbers<[1], [0], [0], [1], [0, 0, 1, 1], [], []>} : vector<8x256xbf16>, vector<256x896xbf16>, vector<8x896xf32> -> vector<8x896xf32>
    %c0_15 = arith.constant 0 : index
    %c0_16 = arith.constant 0 : index
    %19 = vector.load %arg7[%c0_15, %c0_16] : memref<1x896xf32, #tpu.memory_space<vmem>>, vector<1x896xf32>
    %20 = vector.broadcast %19 : vector<1x896xf32> to vector<8x896xf32>
    %21 = arith.addf %18, %20 : vector<8x896xf32>
    %22 = math.tanh %21 : vector<8x896xf32>
    %c0_17 = arith.constant 0 : index
    %c0_18 = arith.constant 0 : index
    %23 = vector.load %arg8[%c0_17, %c0_18] : memref<8x896xf32, #tpu.memory_space<vmem>>, vector<8x896xf32>
    tpu.vector_store %arg8[%c0_17, %c0_18], %22 {strides = array<i32>} : memref<8x896xf32, #tpu.memory_space<vmem>>, vector<8x896xf32>,
    return
  }
  func.func @transform_0(%arg0: i32) -> (i32, i32) {
    %c0_i32 = arith.constant 0 : i32
    %c0_i32_0 = arith.constant 0 : i32
    return %arg0, %c0_i32 : i32, i32
  }
  func.func @transform_1(%arg0: i32) -> (i32, i32) {
    %c0_i32 = arith.constant 0 : i32
    %c0_i32_0 = arith.constant 0 : i32
    %c0_i32_1 = arith.constant 0 : i32
    return %c0_i32, %c0_i32_0 : i32, i32
  }
  func.func @transform_2(%arg0: i32) -> (i32, i32) {
    %c0_i32 = arith.constant 0 : i32
    %c0_i32_0 = arith.constant 0 : i32
    %c0_i32_1 = arith.constant 0 : i32
    return %c0_i32, %c0_i32_0 : i32, i32
  }
  func.func @transform_3(%arg0: i32) -> (i32, i32) {
    %c0_i32 = arith.constant 0 : i32
    %c0_i32_0 = arith.constant 0 : i32
    %c0_i32_1 = arith.constant 0 : i32
    return %c0_i32, %c0_i32_0 : i32, i32
  }
  func.func @transform_4(%arg0: i32) -> (i32, i32) {
    %c0_i32 = arith.constant 0 : i32
    %c0_i32_0 = arith.constant 0 : i32
    %c0_i32_1 = arith.constant 0 : i32
    return %c0_i32, %c0_i32_0 : i32, i32
  }
  func.func @transform_5(%arg0: i32) -> (i32, i32) {
    %c0_i32 = arith.constant 0 : i32
    %c0_i32_0 = arith.constant 0 : i32
    %c0_i32_1 = arith.constant 0 : i32
    return %c0_i32, %c0_i32_0 : i32, i32
  }
  func.func @transform_6(%arg0: i32) -> (i32, i32) {
    %c0_i32 = arith.constant 0 : i32
    %c0_i32_0 = arith.constant 0 : i32
    %c0_i32_1 = arith.constant 0 : i32
    return %c0_i32, %c0_i32_0 : i32, i32
  }
  func.func @transform_7(%arg0: i32) -> (i32, i32) {
    %c0_i32 = arith.constant 0 : i32
    %c0_i32_0 = arith.constant 0 : i32
    return %arg0, %c0_i32 : i32, i32
  }
}

</mosaic_0001>

<llo_original>
// kernel: generator_forward.1
$region0: #{generator_forward.1}
  #allocation0 [shape = 'u32[]', space=smem, size = 0x4, offset = 0x4, fixed_abs, tag = 'smem constant byte address 0x4 - core index']
  #allocation1 [shape = 'u32[144,128]{1,0:T(1,128)}', space=vmem, size = 0x12000, scoped, tag = 'internal scratch']
  %s0 = inlined_call_operand.vmem [shape: bf16[8,128], index: 0, kind: input, shape index: {}]
  %s1 = inlined_call_operand.vmem [shape: bf16[128,256], index: 1, kind: input, shape index: {}]
  %s2 = inlined_call_operand.vmem [shape: f32[1,256], index: 2, kind: input, shape index: {}]
  %s3 = inlined_call_operand.vmem [shape: bf16[256,256], index: 3, kind: input, shape index: {}]
  %s4 = inlined_call_operand.vmem [shape: f32[1,256], index: 4, kind: input, shape index: {}]
  %s5 = inlined_call_operand.vmem [shape: bf16[256,896], index: 5, kind: input, shape index: {}]
  %s6 = inlined_call_operand.vmem [shape: f32[1,896], index: 6, kind: input, shape index: {}]
  %s7 = inlined_call_operand.vmem [shape: f32[8,896], index: 7, kind: output, shape index: {}]
  %s8 = sld [smem:[#allocation0]]
  $region38: #{generator_forward.1} parent=0
    _
  %s10 = ssub.s32 1, %s8
  %s11 = scalar_select 0, %s10, %s8
  // Predicated region
  $region2: #{generator_forward.1} parent=0 // pred_check
    _
  $region3: #{generator_forward.1} parent=0 // pred_check_branch
    %13 = sbr.rel (0) target = $region5
  $region4: #{generator_forward.1} parent=0 // pred_region
    _
  $region5: #{generator_forward.1} parent=0 // pred_fallthru
    _
  // Predicated region
  $region6: #{generator_forward.1} parent=0 // pred_check
    _
  $region7: #{generator_forward.1} parent=0 // pred_check_branch
    %15 = sbr.rel (0) target = $region9
  $region8: #{generator_forward.1} parent=0 // pred_region
    _
  $region9: #{generator_forward.1} parent=0 // pred_fallthru
    _
  // Predicated region
  $region10: #{generator_forward.1} parent=0 // pred_check
    _
  $region11: #{generator_forward.1} parent=0 // pred_check_branch
    %17 = sbr.rel (0) target = $region13
  $region12: #{generator_forward.1} parent=0 // pred_region
    _
  $region13: #{generator_forward.1} parent=0 // pred_fallthru
    _
  // Predicated region
  $region14: #{generator_forward.1} parent=0 // pred_check
    _
  $region15: #{generator_forward.1} parent=0 // pred_check_branch
    %19 = sbr.rel (0) target = $region17
  $region16: #{generator_forward.1} parent=0 // pred_region
    _
  $region17: #{generator_forward.1} parent=0 // pred_fallthru
    _
  // Predicated region
  $region18: #{generator_forward.1} parent=0 // pred_check
    _
  $region19: #{generator_forward.1} parent=0 // pred_check_branch
    %21 = sbr.rel (0) target = $region21
  $region20: #{generator_forward.1} parent=0 // pred_region
    _
  $region21: #{generator_forward.1} parent=0 // pred_fallthru
    _
  // Predicated region
  $region22: #{generator_forward.1} parent=0 // pred_check
    _
  $region23: #{generator_forward.1} parent=0 // pred_check_branch
    %23 = sbr.rel (0) target = $region25
  $region24: #{generator_forward.1} parent=0 // pred_region
    _
  $region25: #{generator_forward.1} parent=0 // pred_fallthru
    _
  // Predicated region
  $region26: #{generator_forward.1} parent=0 // pred_check
    _
  $region27: #{generator_forward.1} parent=0 // pred_check_branch
    %25 = sbr.rel (0) target = $region29
  $region28: #{generator_forward.1} parent=0 // pred_region
    _
  $region29: #{generator_forward.1} parent=0 // pred_fallthru
    _
  %v27 = vld [vmem:[%s0] sm:$0xf]
  %v28 = vld [vmem:[%s1] sm:$0xff]
  %v29 = vld [vmem:[%s1 + $0x8] sm:$0xff]
  %v30 = vld [vmem:[%s1 + $0x10] sm:$0xff]
  %v31 = vld [vmem:[%s1 + $0x18] sm:$0xff]
  %v32 = vld [vmem:[%s1 + $0x20] sm:$0xff]
  %v33 = vld [vmem:[%s1 + $0x28] sm:$0xff]
  %v34 = vld [vmem:[%s1 + $0x30] sm:$0xff]
  %v35 = vld [vmem:[%s1 + $0x38] sm:$0xff]
  %v36 = vld [vmem:[%s1 + $0x40] sm:$0xff]
  %v37 = vld [vmem:[%s1 + $0x48] sm:$0xff]
  %v38 = vld [vmem:[%s1 + $0x50] sm:$0xff]
  %v39 = vld [vmem:[%s1 + $0x58] sm:$0xff]
  %v40 = vld [vmem:[%s1 + $0x60] sm:$0xff]
  %v41 = vld [vmem:[%s1 + $0x68] sm:$0xff]
  %v42 = vld [vmem:[%s1 + $0x70] sm:$0xff]
  %v43 = vld [vmem:[%s1 + $0x78] sm:$0xff]
  %v44 = vld [vmem:[%s2] sm:$0x3]
  %v46 = vlaneseq
  %v47 = vshrl.u32 %v46, 7
  %v48 = vsub.s32 0, %v47
  %v49 = vrot.slane %v44, %v48
  %v50 = vlaneseq
  %v51 = vshrl.u32 %v50, 7
  %v52 = vsub.s32 1, %v51
  %v53 = vrot.slane %v44, %v52
  %v72 = vunpack.c.l.b16 %v28
  %v73 = vunpack.c.h.b16 %v28
  %v74 = vunpack.c.l.b16 %v29
  %v75 = vunpack.c.h.b16 %v29
  %v76 = vunpack.c.l.b16 %v30
  %v77 = vunpack.c.h.b16 %v30
  %v78 = vunpack.c.l.b16 %v31
  %v79 = vunpack.c.h.b16 %v31
  %v80 = vunpack.c.l.b16 %v32
  %v81 = vunpack.c.h.b16 %v32
  %v82 = vunpack.c.l.b16 %v33
  %v83 = vunpack.c.h.b16 %v33
  %v84 = vunpack.c.l.b16 %v34
  %v85 = vunpack.c.h.b16 %v34
  %v86 = vunpack.c.l.b16 %v35
  %v87 = vunpack.c.h.b16 %v35
  %v88 = vunpack.c.l.b16 %v36
  %v89 = vunpack.c.h.b16 %v36
  %v90 = vunpack.c.l.b16 %v37
  %v91 = vunpack.c.h.b16 %v37
  %v92 = vunpack.c.l.b16 %v38
  %v93 = vunpack.c.h.b16 %v38
  %v94 = vunpack.c.l.b16 %v39
  %v95 = vunpack.c.h.b16 %v39
  %v96 = vunpack.c.l.b16 %v40
  %v97 = vunpack.c.h.b16 %v40
  %v98 = vunpack.c.l.b16 %v41
  %v99 = vunpack.c.h.b16 %v41
  %v100 = vunpack.c.l.b16 %v42
  %v101 = vunpack.c.h.b16 %v42
  %v102 = vunpack.c.l.b16 %v43
  %v103 = vunpack.c.h.b16 %v43
  %v104 = vpack.c.b16 %v74, %v72
  %v105 = vpack.c.b16 %v75, %v73
  %v106 = vpack.c.b16 %v78, %v76
  %v107 = vpack.c.b16 %v79, %v77
  %v108 = vpack.c.b16 %v82, %v80
  %v109 = vpack.c.b16 %v83, %v81
  %v110 = vpack.c.b16 %v86, %v84
  %v111 = vpack.c.b16 %v87, %v85
  %v112 = vpack.c.b16 %v90, %v88
  %v113 = vpack.c.b16 %v91, %v89
  %v114 = vpack.c.b16 %v94, %v92
  %v115 = vpack.c.b16 %v95, %v93
  %v116 = vpack.c.b16 %v98, %v96
  %v117 = vpack.c.b16 %v99, %v97
  %v118 = vpack.c.b16 %v102, %v100
  %v119 = vpack.c.b16 %v103, %v101
  %136 = vmatprep.subr.bf16.mxu0 %v105
  %137 = vmatpush1.bf16.msra.mxu0 %v104
  %138 = vmatprep.subr.bf16.mxu0 %v107
  %139 = vmatpush1.bf16.msra.mxu0 %v106
  %140 = vmatprep.subr.bf16.mxu0 %v109
  %141 = vmatpush1.bf16.msra.mxu0 %v108
  %142 = vmatprep.subr.bf16.mxu0 %v111
  %143 = vmatpush1.bf16.msra.mxu0 %v110
  %144 = vmatprep.subr.bf16.mxu0 %v113
  %145 = vmatpush1.bf16.msra.mxu0 %v112
  %146 = vmatprep.subr.bf16.mxu0 %v115
  %147 = vmatpush1.bf16.msra.mxu0 %v114
  %148 = vmatprep.subr.bf16.mxu0 %v117
  %149 = vmatpush1.bf16.msra.mxu0 %v116
  %150 = vmatprep.subr.bf16.mxu0 %v119
  %151 = vmatpush1.bf16.msra.mxu0 %v118
  %152 = vmatprep.subr.bf16.mxu0 0
  %153 = vmatpush1.bf16.msra.mxu0 0
  %154 = vmatprep.subr.bf16.mxu0 0
  %155 = vmatpush1.bf16.msra.mxu0 0
  %156 = vmatprep.subr.bf16.mxu0 0
  %157 = vmatpush1.bf16.msra.mxu0 0
  %158 = vmatprep.subr.bf16.mxu0 0
  %159 = vmatpush1.bf16.msra.mxu0 0
  %160 = vmatprep.subr.bf16.mxu0 0
  %161 = vmatpush1.bf16.msra.mxu0 0
  %162 = vmatprep.subr.bf16.mxu0 0
  %163 = vmatpush1.bf16.msra.mxu0 0
  %164 = vmatprep.subr.bf16.mxu0 0
  %165 = vmatpush1.bf16.msra.mxu0 0
  %166 = vmatprep.subr.bf16.mxu0 0
  %167 = vmatpush1.bf16.msra.mxu0 0
  %168 = vmatprep.mubr.bf16.mxu0 0
  %169 = vmatmul.mubr.bf16.gmra.mrb[0].mxu0 %v27
  %v170 = vpop.f32.mrb[0].mxu0
  %v171 = vadd.f32 %v49, %v170
  %v172 = vpop.f32.mrb[0].mxu0
  %v173 = vadd.f32 %v53, %v172
  %v174 = vpop.f32.mrb[0].mxu0
  %v175 = vpop.f32.mrb[0].mxu0
  %176 = vdwg.mxu0
  %v177 = vmax.f32 %v171, 0.0
  %v178 = vmax.f32 %v173, 0.0
  %v179 = vpack.c.bf16 %v177, %v177
  %v180 = vpack.c.bf16 %v178, %v178
  %v181 = vld [vmem:[%s3] sm:$0xff]
  %v182 = vld [vmem:[%s3 + $0x8] sm:$0xff]
  %v183 = vld [vmem:[%s3 + $0x10] sm:$0xff]
  %v184 = vld [vmem:[%s3 + $0x18] sm:$0xff]
  %v185 = vld [vmem:[%s3 + $0x20] sm:$0xff]
  %v186 = vld [vmem:[%s3 + $0x28] sm:$0xff]
  %v187 = vld [vmem:[%s3 + $0x30] sm:$0xff]
  %v188 = vld [vmem:[%s3 + $0x38] sm:$0xff]
  %v189 = vld [vmem:[%s3 + $0x40] sm:$0xff]
  %v190 = vld [vmem:[%s3 + $0x48] sm:$0xff]
  %v191 = vld [vmem:[%s3 + $0x50] sm:$0xff]
  %v192 = vld [vmem:[%s3 + $0x58] sm:$0xff]
  %v193 = vld [vmem:[%s3 + $0x60] sm:$0xff]
  %v194 = vld [vmem:[%s3 + $0x68] sm:$0xff]
  %v195 = vld [vmem:[%s3 + $0x70] sm:$0xff]
  %v196 = vld [vmem:[%s3 + $0x78] sm:$0xff]
  %v197 = vld [vmem:[%s3 + $0x80] sm:$0xff]
  %v198 = vld [vmem:[%s3 + $0x88] sm:$0xff]
  %v199 = vld [vmem:[%s3 + $0x90] sm:$0xff]
  %v200 = vld [vmem:[%s3 + $0x98] sm:$0xff]
  %v201 = vld [vmem:[%s3 + $0xa0] sm:$0xff]
  %v202 = vld [vmem:[%s3 + $0xa8] sm:$0xff]
  %v203 = vld [vmem:[%s3 + $0xb0] sm:$0xff]
  %v204 = vld [vmem:[%s3 + $0xb8] sm:$0xff]
  %v205 = vld [vmem:[%s3 + $0xc0] sm:$0xff]
  %v206 = vld [vmem:[%s3 + $0xc8] sm:$0xff]
  %v207 = vld [vmem:[%s3 + $0xd0] sm:$0xff]
  %v208 = vld [vmem:[%s3 + $0xd8] sm:$0xff]
  %v209 = vld [vmem:[%s3 + $0xe0] sm:$0xff]
  %v210 = vld [vmem:[%s3 + $0xe8] sm:$0xff]
  %v211 = vld [vmem:[%s3 + $0xf0] sm:$0xff]
  %v212 = vld [vmem:[%s3 + $0xf8] sm:$0xff]
  %v213 = vld [vmem:[%s4] sm:$0x3]
  %v215 = vlaneseq
  %v216 = vshrl.u32 %v215, 7
  %v217 = vsub.s32 0, %v216
  %v218 = vrot.slane %v213, %v217
  %v219 = vlaneseq
  %v220 = vshrl.u32 %v219, 7
  %v221 = vsub.s32 1, %v220
  %v222 = vrot.slane %v213, %v221
  %v257 = vunpack.c.l.b16 %v181
  %v258 = vunpack.c.h.b16 %v181
  %v259 = vunpack.c.l.b16 %v182
  %v260 = vunpack.c.h.b16 %v182
  %v261 = vunpack.c.l.b16 %v183
  %v262 = vunpack.c.h.b16 %v183
  %v263 = vunpack.c.l.b16 %v184
  %v264 = vunpack.c.h.b16 %v184
  %v265 = vunpack.c.l.b16 %v185
  %v266 = vunpack.c.h.b16 %v185
  %v267 = vunpack.c.l.b16 %v186
  %v268 = vunpack.c.h.b16 %v186
  %v269 = vunpack.c.l.b16 %v187
  %v270 = vunpack.c.h.b16 %v187
  %v271 = vunpack.c.l.b16 %v188
  %v272 = vunpack.c.h.b16 %v188
  %v273 = vunpack.c.l.b16 %v189
  %v274 = vunpack.c.h.b16 %v189
  %v275 = vunpack.c.l.b16 %v190
  %v276 = vunpack.c.h.b16 %v190
  %v277 = vunpack.c.l.b16 %v191
  %v278 = vunpack.c.h.b16 %v191
  %v279 = vunpack.c.l.b16 %v192
  %v280 = vunpack.c.h.b16 %v192
  %v281 = vunpack.c.l.b16 %v193
  %v282 = vunpack.c.h.b16 %v193
  %v283 = vunpack.c.l.b16 %v194
  %v284 = vunpack.c.h.b16 %v194
  %v285 = vunpack.c.l.b16 %v195
  %v286 = vunpack.c.h.b16 %v195
  %v287 = vunpack.c.l.b16 %v196
  %v288 = vunpack.c.h.b16 %v196
  %v289 = vunpack.c.l.b16 %v197
  %v290 = vunpack.c.h.b16 %v197
  %v291 = vunpack.c.l.b16 %v198
  %v292 = vunpack.c.h.b16 %v198
  %v293 = vunpack.c.l.b16 %v199
  %v294 = vunpack.c.h.b16 %v199
  %v295 = vunpack.c.l.b16 %v200
  %v296 = vunpack.c.h.b16 %v200
  %v297 = vunpack.c.l.b16 %v201
  %v298 = vunpack.c.h.b16 %v201
  %v299 = vunpack.c.l.b16 %v202
  %v300 = vunpack.c.h.b16 %v202
  %v301 = vunpack.c.l.b16 %v203
  %v302 = vunpack.c.h.b16 %v203
  %v303 = vunpack.c.l.b16 %v204
  %v304 = vunpack.c.h.b16 %v204
  %v305 = vunpack.c.l.b16 %v205
  %v306 = vunpack.c.h.b16 %v205
  %v307 = vunpack.c.l.b16 %v206
  %v308 = vunpack.c.h.b16 %v206
  %v309 = vunpack.c.l.b16 %v207
  %v310 = vunpack.c.h.b16 %v207
  %v311 = vunpack.c.l.b16 %v208
  %v312 = vunpack.c.h.b16 %v208
  %v313 = vunpack.c.l.b16 %v209
  %v314 = vunpack.c.h.b16 %v209
  %v315 = vunpack.c.l.b16 %v210
  %v316 = vunpack.c.h.b16 %v210
  %v317 = vunpack.c.l.b16 %v211
  %v318 = vunpack.c.h.b16 %v211
  %v319 = vunpack.c.l.b16 %v212
  %v320 = vunpack.c.h.b16 %v212
  %v321 = vpack.c.b16 %v259, %v257
  %v322 = vpack.c.b16 %v260, %v258
  %v323 = vpack.c.b16 %v263, %v261
  %v324 = vpack.c.b16 %v264, %v262
  %v325 = vpack.c.b16 %v267, %v265
  %v326 = vpack.c.b16 %v268, %v266
  %v327 = vpack.c.b16 %v271, %v269
  %v328 = vpack.c.b16 %v272, %v270
  %v329 = vpack.c.b16 %v275, %v273
  %v330 = vpack.c.b16 %v276, %v274
  %v331 = vpack.c.b16 %v279, %v277
  %v332 = vpack.c.b16 %v280, %v278
  %v333 = vpack.c.b16 %v283, %v281
  %v334 = vpack.c.b16 %v284, %v282
  %v335 = vpack.c.b16 %v287, %v285
  %v336 = vpack.c.b16 %v288, %v286
  %v337 = vpack.c.b16 %v291, %v289
  %v338 = vpack.c.b16 %v292, %v290
  %v339 = vpack.c.b16 %v295, %v293
  %v340 = vpack.c.b16 %v296, %v294
  %v341 = vpack.c.b16 %v299, %v297
  %v342 = vpack.c.b16 %v300, %v298
  %v343 = vpack.c.b16 %v303, %v301
  %v344 = vpack.c.b16 %v304, %v302
  %v345 = vpack.c.b16 %v307, %v305
  %v346 = vpack.c.b16 %v308, %v306
  %v347 = vpack.c.b16 %v311, %v309
  %v348 = vpack.c.b16 %v312, %v310
  %v349 = vpack.c.b16 %v315, %v313
  %v350 = vpack.c.b16 %v316, %v314
  %v351 = vpack.c.b16 %v319, %v317
  %v352 = vpack.c.b16 %v320, %v318
  %385 = vmatprep.subr.bf16.mxu0 %v322
  %386 = vmatpush1.bf16.msra.mxu0 %v321
  %387 = vmatprep.subr.bf16.mxu0 %v324
  %388 = vmatpush1.bf16.msra.mxu0 %v323
  %389 = vmatprep.subr.bf16.mxu0 %v326
  %390 = vmatpush1.bf16.msra.mxu0 %v325
  %391 = vmatprep.subr.bf16.mxu0 %v328
  %392 = vmatpush1.bf16.msra.mxu0 %v327
  %393 = vmatprep.subr.bf16.mxu0 %v330
  %394 = vmatpush1.bf16.msra.mxu0 %v329
  %395 = vmatprep.subr.bf16.mxu0 %v332
  %396 = vmatpush1.bf16.msra.mxu0 %v331
  %397 = vmatprep.subr.bf16.mxu0 %v334
  %398 = vmatpush1.bf16.msra.mxu0 %v333
  %399 = vmatprep.subr.bf16.mxu0 %v336
  %400 = vmatpush1.bf16.msra.mxu0 %v335
  %401 = vmatprep.subr.bf16.mxu0 %v338
  %402 = vmatpush1.bf16.msra.mxu0 %v337
  %403 = vmatprep.subr.bf16.mxu0 %v340
  %404 = vmatpush1.bf16.msra.mxu0 %v339
  %405 = vmatprep.subr.bf16.mxu0 %v342
  %406 = vmatpush1.bf16.msra.mxu0 %v341
  %407 = vmatprep.subr.bf16.mxu0 %v344
  %408 = vmatpush1.bf16.msra.mxu0 %v343
  %409 = vmatprep.subr.bf16.mxu0 %v346
  %410 = vmatpush1.bf16.msra.mxu0 %v345
  %411 = vmatprep.subr.bf16.mxu0 %v348
  %412 = vmatpush1.bf16.msra.mxu0 %v347
  %413 = vmatprep.subr.bf16.mxu0 %v350
  %414 = vmatpush1.bf16.msra.mxu0 %v349
  %415 = vmatprep.subr.bf16.mxu0 %v352
  %416 = vmatpush1.bf16.msra.mxu0 %v351
  %417 = vmatprep.mubr.bf16.mxu0 %v180
  %418 = vmatmul.mubr.bf16.gmra.mrb[0].mxu0 %v179
  %v419 = vpop.f32.mrb[0].mxu0
  %v420 = vadd.f32 %v218, %v419
  %v421 = vpop.f32.mrb[0].mxu0
  %v422 = vadd.f32 %v222, %v421
  %v423 = vpop.f32.mrb[0].mxu0
  %v424 = vpop.f32.mrb[0].mxu0
  %425 = vdwg.mxu0
  %v426 = vmax.f32 %v420, 0.0
  %v427 = vmax.f32 %v422, 0.0
  %v428 = vpack.c.bf16 %v426, %v426
  %v429 = vpack.c.bf16 %v427, %v427
  %v430 = vld [vmem:[%s5] sm:$0xff]
  %v431 = vld [vmem:[%s5 + $0x8] sm:$0xff]
  %v432 = vld [vmem:[%s5 + $0x10] sm:$0xff]
  %v433 = vld [vmem:[%s5 + $0x18] sm:$0xf]
  %v434 = vld [vmem:[%s5 + $0x1c] sm:$0xff]
  %v435 = vld [vmem:[%s5 + $0x24] sm:$0xff]
  %v436 = vld [vmem:[%s5 + $0x2c] sm:$0xff]
  %v437 = vld [vmem:[%s5 + $0x34] sm:$0xf]
  %v438 = vld [vmem:[%s5 + $0x38] sm:$0xff]
  %v439 = vld [vmem:[%s5 + $0x40] sm:$0xff]
  %v440 = vld [vmem:[%s5 + $0x48] sm:$0xff]
  %v441 = vld [vmem:[%s5 + $0x50] sm:$0xf]
  %v442 = vld [vmem:[%s5 + $0x54] sm:$0xff]
  %v443 = vld [vmem:[%s5 + $0x5c] sm:$0xff]
  %v444 = vld [vmem:[%s5 + $0x64] sm:$0xff]
  %v445 = vld [vmem:[%s5 + $0x6c] sm:$0xf]
  %v446 = vld [vmem:[%s5 + $0x70] sm:$0xff]
  %v447 = vld [vmem:[%s5 + $0x78] sm:$0xff]
  %v448 = vld [vmem:[%s5 + $0x80] sm:$0xff]
  %v449 = vld [vmem:[%s5 + $0x88] sm:$0xf]
  %v450 = vld [vmem:[%s5 + $0x8c] sm:$0xff]
  %v451 = vld [vmem:[%s5 + $0x94] sm:$0xff]
  %v452 = vld [vmem:[%s5 + $0x9c] sm:$0xff]
  %v453 = vld [vmem:[%s5 + $0xa4] sm:$0xf]
  %v454 = vld [vmem:[%s5 + $0xa8] sm:$0xff]
  %v455 = vld [vmem:[%s5 + $0xb0] sm:$0xff]
  %v456 = vld [vmem:[%s5 + $0xb8] sm:$0xff]
  %v457 = vld [vmem:[%s5 + $0xc0] sm:$0xf]
  %v458 = vld [vmem:[%s5 + $0xc4] sm:$0xff]
  %v459 = vld [vmem:[%s5 + $0xcc] sm:$0xff]
  %v460 = vld [vmem:[%s5 + $0xd4] sm:$0xff]
  %v461 = vld [vmem:[%s5 + $0xdc] sm:$0xf]
  %v462 = vld [vmem:[%s5 + $0xe0] sm:$0xff]
  %v463 = vld [vmem:[%s5 + $0xe8] sm:$0xff]
  %v464 = vld [vmem:[%s5 + $0xf0] sm:$0xff]
  %v465 = vld [vmem:[%s5 + $0xf8] sm:$0xf]
  %v466 = vld [vmem:[%s5 + $0xfc] sm:$0xff]
  %v467 = vld [vmem:[%s5 + $0x104] sm:$0xff]
  %v468 = vld [vmem:[%s5 + $0x10c] sm:$0xff]
  %v469 = vld [vmem:[%s5 + $0x114] sm:$0xf]
  %v470 = vld [vmem:[%s5 + $0x118] sm:$0xff]
  %v471 = vld [vmem:[%s5 + $0x120] sm:$0xff]
  %v472 = vld [vmem:[%s5 + $0x128] sm:$0xff]
  %v473 = vld [vmem:[%s5 + $0x130] sm:$0xf]
  %v474 = vld [vmem:[%s5 + $0x134] sm:$0xff]
  %v475 = vld [vmem:[%s5 + $0x13c] sm:$0xff]
  %v476 = vld [vmem:[%s5 + $0x144] sm:$0xff]
  %v477 = vld [vmem:[%s5 + $0x14c] sm:$0xf]
  %v478 = vld [vmem:[%s5 + $0x150] sm:$0xff]
  %v479 = vld [vmem:[%s5 + $0x158] sm:$0xff]
  %v480 = vld [vmem:[%s5 + $0x160] sm:$0xff]
  %v481 = vld [vmem:[%s5 + $0x168] sm:$0xf]
  %v482 = vld [vmem:[%s5 + $0x16c] sm:$0xff]
  %v483 = vld [vmem:[%s5 + $0x174] sm:$0xff]
  %v484 = vld [vmem:[%s5 + $0x17c] sm:$0xff]
  %v485 = vld [vmem:[%s5 + $0x184] sm:$0xf]
  %v486 = vld [vmem:[%s5 + $0x188] sm:$0xff]
  %v487 = vld [vmem:[%s5 + $0x190] sm:$0xff]
  %v488 = vld [vmem:[%s5 + $0x198] sm:$0xff]
  %v489 = vld [vmem:[%s5 + $0x1a0] sm:$0xf]
  %v490 = vld [vmem:[%s5 + $0x1a4] sm:$0xff]
  %v491 = vld [vmem:[%s5 + $0x1ac] sm:$0xff]
  %v492 = vld [vmem:[%s5 + $0x1b4] sm:$0xff]
  %v493 = vld [vmem:[%s5 + $0x1bc] sm:$0xf]
  %v494 = vld [vmem:[%s5 + $0x1c0] sm:$0xff]
  %v495 = vld [vmem:[%s5 + $0x1c8] sm:$0xff]
  %v496 = vld [vmem:[%s5 + $0x1d0] sm:$0xff]
  %v497 = vld [vmem:[%s5 + $0x1d8] sm:$0xf]
  %v498 = vld [vmem:[%s5 + $0x1dc] sm:$0xff]
  %v499 = vld [vmem:[%s5 + $0x1e4] sm:$0xff]
  %v500 = vld [vmem:[%s5 + $0x1ec] sm:$0xff]
  %v501 = vld [vmem:[%s5 + $0x1f4] sm:$0xf]
  %v502 = vld [vmem:[%s5 + $0x1f8] sm:$0xff]
  %v503 = vld [vmem:[%s5 + $0x200] sm:$0xff]
  %v504 = vld [vmem:[%s5 + $0x208] sm:$0xff]
  %v505 = vld [vmem:[%s5 + $0x210] sm:$0xf]
  %v506 = vld [vmem:[%s5 + $0x214] sm:$0xff]
  %v507 = vld [vmem:[%s5 + $0x21c] sm:$0xff]
  %v508 = vld [vmem:[%s5 + $0x224] sm:$0xff]
  %v509 = vld [vmem:[%s5 + $0x22c] sm:$0xf]
  %v510 = vld [vmem:[%s5 + $0x230] sm:$0xff]
  %v511 = vld [vmem:[%s5 + $0x238] sm:$0xff]
  %v512 = vld [vmem:[%s5 + $0x240] sm:$0xff]
  %v513 = vld [vmem:[%s5 + $0x248] sm:$0xf]
  %v514 = vld [vmem:[%s5 + $0x24c] sm:$0xff]
  %v515 = vld [vmem:[%s5 + $0x254] sm:$0xff]
  %v516 = vld [vmem:[%s5 + $0x25c] sm:$0xff]
  %v517 = vld [vmem:[%s5 + $0x264] sm:$0xf]
  %v518 = vld [vmem:[%s5 + $0x268] sm:$0xff]
  %v519 = vld [vmem:[%s5 + $0x270] sm:$0xff]
  %v520 = vld [vmem:[%s5 + $0x278] sm:$0xff]
  %v521 = vld [vmem:[%s5 + $0x280] sm:$0xf]
  %v522 = vld [vmem:[%s5 + $0x284] sm:$0xff]
  %v523 = vld [vmem:[%s5 + $0x28c] sm:$0xff]
  %v524 = vld [vmem:[%s5 + $0x294] sm:$0xff]
  %v525 = vld [vmem:[%s5 + $0x29c] sm:$0xf]
  %v526 = vld [vmem:[%s5 + $0x2a0] sm:$0xff]
  %v527 = vld [vmem:[%s5 + $0x2a8] sm:$0xff]
  %v528 = vld [vmem:[%s5 + $0x2b0] sm:$0xff]
  %v529 = vld [vmem:[%s5 + $0x2b8] sm:$0xf]
  %v530 = vld [vmem:[%s5 + $0x2bc] sm:$0xff]
  %v531 = vld [vmem:[%s5 + $0x2c4] sm:$0xff]
  %v532 = vld [vmem:[%s5 + $0x2cc] sm:$0xff]
  %v533 = vld [vmem:[%s5 + $0x2d4] sm:$0xf]
  %v534 = vld [vmem:[%s5 + $0x2d8] sm:$0xff]
  %v535 = vld [vmem:[%s5 + $0x2e0] sm:$0xff]
  %v536 = vld [vmem:[%s5 + $0x2e8] sm:$0xff]
  %v537 = vld [vmem:[%s5 + $0x2f0] sm:$0xf]
  %v538 = vld [vmem:[%s5 + $0x2f4] sm:$0xff]
  %v539 = vld [vmem:[%s5 + $0x2fc] sm:$0xff]
  %v540 = vld [vmem:[%s5 + $0x304] sm:$0xff]
  %v541 = vld [vmem:[%s5 + $0x30c] sm:$0xf]
  %v542 = vld [vmem:[%s5 + $0x310] sm:$0xff]
  %v543 = vld [vmem:[%s5 + $0x318] sm:$0xff]
  %v544 = vld [vmem:[%s5 + $0x320] sm:$0xff]
  %v545 = vld [vmem:[%s5 + $0x328] sm:$0xf]
  %v546 = vld [vmem:[%s5 + $0x32c] sm:$0xff]
  %v547 = vld [vmem:[%s5 + $0x334] sm:$0xff]
  %v548 = vld [vmem:[%s5 + $0x33c] sm:$0xff]
  %v549 = vld [vmem:[%s5 + $0x344] sm:$0xf]
  %v550 = vld [vmem:[%s5 + $0x348] sm:$0xff]
  %v551 = vld [vmem:[%s5 + $0x350] sm:$0xff]
  %v552 = vld [vmem:[%s5 + $0x358] sm:$0xff]
  %v553 = vld [vmem:[%s5 + $0x360] sm:$0xf]
  %v554 = vld [vmem:[%s5 + $0x364] sm:$0xff]
  %v555 = vld [vmem:[%s5 + $0x36c] sm:$0xff]
  %v556 = vld [vmem:[%s5 + $0x374] sm:$0xff]
  %v557 = vld [vmem:[%s5 + $0x37c] sm:$0xf]
  %v558 = vld [vmem:[%s6] sm:$0xff]
  %v560 = vlaneseq
  %v561 = vshrl.u32 %v560, 7
  %v562 = vsub.s32 0, %v561
  %v563 = vrot.slane %v558, %v562
  %v564 = vlaneseq
  %v565 = vshrl.u32 %v564, 7
  %v566 = vsub.s32 1, %v565
  %v567 = vrot.slane %v558, %v566
  %v568 = vlaneseq
  %v569 = vshrl.u32 %v568, 7
  %v570 = vsub.s32 2, %v569
  %v571 = vrot.slane %v558, %v570
  %v572 = vlaneseq
  %v573 = vshrl.u32 %v572, 7
  %v574 = vsub.s32 3, %v573
  %v575 = vrot.slane %v558, %v574
  %v576 = vlaneseq
  %v577 = vshrl.u32 %v576, 7
  %v578 = vsub.s32 4, %v577
  %v579 = vrot.slane %v558, %v578
  %v580 = vlaneseq
  %v581 = vshrl.u32 %v580, 7
  %v582 = vsub.s32 5, %v581
  %v583 = vrot.slane %v558, %v582
  %v584 = vlaneseq
  %v585 = vshrl.u32 %v584, 7
  %v586 = vsub.s32 6, %v585
  %v587 = vrot.slane %v558, %v586
  %v723 = vunpack.c.l.b16 %v430
  %v724 = vunpack.c.h.b16 %v430
  %v725 = vunpack.c.l.b16 %v431
  %v726 = vunpack.c.h.b16 %v431
  %v727 = vunpack.c.l.b16 %v432
  %v728 = vunpack.c.h.b16 %v432
  %v729 = vunpack.c.l.b16 %v433
  %v730 = vunpack.c.l.b16 %v434
  %v731 = vunpack.c.h.b16 %v434
  %v732 = vunpack.c.l.b16 %v435
  %v733 = vunpack.c.h.b16 %v435
  %v734 = vunpack.c.l.b16 %v436
  %v735 = vunpack.c.h.b16 %v436
  %v736 = vunpack.c.l.b16 %v437
  %v737 = vunpack.c.l.b16 %v438
  %v738 = vunpack.c.h.b16 %v438
  %v739 = vunpack.c.l.b16 %v439
  %v740 = vunpack.c.h.b16 %v439
  %v741 = vunpack.c.l.b16 %v440
  %v742 = vunpack.c.h.b16 %v440
  %v743 = vunpack.c.l.b16 %v441
  %v744 = vunpack.c.l.b16 %v442
  %v745 = vunpack.c.h.b16 %v442
  %v746 = vunpack.c.l.b16 %v443
  %v747 = vunpack.c.h.b16 %v443
  %v748 = vunpack.c.l.b16 %v444
  %v749 = vunpack.c.h.b16 %v444
  %v750 = vunpack.c.l.b16 %v445
  %v751 = vunpack.c.l.b16 %v446
  %v752 = vunpack.c.h.b16 %v446
  %v753 = vunpack.c.l.b16 %v447
  %v754 = vunpack.c.h.b16 %v447
  %v755 = vunpack.c.l.b16 %v448
  %v756 = vunpack.c.h.b16 %v448
  %v757 = vunpack.c.l.b16 %v449
  %v758 = vunpack.c.l.b16 %v450
  %v759 = vunpack.c.h.b16 %v450
  %v760 = vunpack.c.l.b16 %v451
  %v761 = vunpack.c.h.b16 %v451
  %v762 = vunpack.c.l.b16 %v452
  %v763 = vunpack.c.h.b16 %v452
  %v764 = vunpack.c.l.b16 %v453
  %v765 = vunpack.c.l.b16 %v454
  %v766 = vunpack.c.h.b16 %v454
  %v767 = vunpack.c.l.b16 %v455
  %v768 = vunpack.c.h.b16 %v455
  %v769 = vunpack.c.l.b16 %v456
  %v770 = vunpack.c.h.b16 %v456
  %v771 = vunpack.c.l.b16 %v457
  %v772 = vunpack.c.l.b16 %v458
  %v773 = vunpack.c.h.b16 %v458
  %v774 = vunpack.c.l.b16 %v459
  %v775 = vunpack.c.h.b16 %v459
  %v776 = vunpack.c.l.b16 %v460
  %v777 = vunpack.c.h.b16 %v460
  %v778 = vunpack.c.l.b16 %v461
  %v779 = vunpack.c.l.b16 %v462
  %v780 = vunpack.c.h.b16 %v462
  %v781 = vunpack.c.l.b16 %v463
  %v782 = vunpack.c.h.b16 %v463
  %v783 = vunpack.c.l.b16 %v464
  %v784 = vunpack.c.h.b16 %v464
  %v785 = vunpack.c.l.b16 %v465
  %v786 = vunpack.c.l.b16 %v466
  %v787 = vunpack.c.h.b16 %v466
  %v788 = vunpack.c.l.b16 %v467
  %v789 = vunpack.c.h.b16 %v467
  %v790 = vunpack.c.l.b16 %v468
  %v791 = vunpack.c.h.b16 %v468
  %v792 = vunpack.c.l.b16 %v469
  %v793 = vunpack.c.l.b16 %v470
  %v794 = vunpack.c.h.b16 %v470
  %v795 = vunpack.c.l.b16 %v471
  %v796 = vunpack.c.h.b16 %v471
  %v797 = vunpack.c.l.b16 %v472
  %v798 = vunpack.c.h.b16 %v472
  %v799 = vunpack.c.l.b16 %v473
  %v800 = vunpack.c.l.b16 %v474
  %v801 = vunpack.c.h.b16 %v474
  %v802 = vunpack.c.l.b16 %v475
  %v803 = vunpack.c.h.b16 %v475
  %v804 = vunpack.c.l.b16 %v476
  %v805 = vunpack.c.h.b16 %v476
  %v806 = vunpack.c.l.b16 %v477
  %v807 = vunpack.c.l.b16 %v478
  %v808 = vunpack.c.h.b16 %v478
  %v809 = vunpack.c.l.b16 %v479
  %v810 = vunpack.c.h.b16 %v479
  %v811 = vunpack.c.l.b16 %v480
  %v812 = vunpack.c.h.b16 %v480
  %v813 = vunpack.c.l.b16 %v481
  %v814 = vunpack.c.l.b16 %v482
  %v815 = vunpack.c.h.b16 %v482
  %v816 = vunpack.c.l.b16 %v483
  %v817 = vunpack.c.h.b16 %v483
  %v818 = vunpack.c.l.b16 %v484
  %v819 = vunpack.c.h.b16 %v484
  %v820 = vunpack.c.l.b16 %v485
  %v821 = vunpack.c.l.b16 %v486
  %v822 = vunpack.c.h.b16 %v486
  %v823 = vunpack.c.l.b16 %v487
  %v824 = vunpack.c.h.b16 %v487
  %v825 = vunpack.c.l.b16 %v488
  %v826 = vunpack.c.h.b16 %v488
  %v827 = vunpack.c.l.b16 %v489
  %v828 = vunpack.c.l.b16 %v490
  %v829 = vunpack.c.h.b16 %v490
  %v830 = vunpack.c.l.b16 %v491
  %v831 = vunpack.c.h.b16 %v491
  %v832 = vunpack.c.l.b16 %v492
  %v833 = vunpack.c.h.b16 %v492
  %v834 = vunpack.c.l.b16 %v493
  %v835 = vunpack.c.l.b16 %v494
  %v836 = vunpack.c.h.b16 %v494
  %v837 = vunpack.c.l.b16 %v495
  %v838 = vunpack.c.h.b16 %v495
  %v839 = vunpack.c.l.b16 %v496
  %v840 = vunpack.c.h.b16 %v496
  %v841 = vunpack.c.l.b16 %v497
  %v842 = vunpack.c.l.b16 %v498
  %v843 = vunpack.c.h.b16 %v498
  %v844 = vunpack.c.l.b16 %v499
  %v845 = vunpack.c.h.b16 %v499
  %v846 = vunpack.c.l.b16 %v500
  %v847 = vunpack.c.h.b16 %v500
  %v848 = vunpack.c.l.b16 %v501
  %v849 = vunpack.c.l.b16 %v502
  %v850 = vunpack.c.h.b16 %v502
  %v851 = vunpack.c.l.b16 %v503
  %v852 = vunpack.c.h.b16 %v503
  %v853 = vunpack.c.l.b16 %v504
  %v854 = vunpack.c.h.b16 %v504
  %v855 = vunpack.c.l.b16 %v505
  %v856 = vunpack.c.l.b16 %v506
  %v857 = vunpack.c.h.b16 %v506
  %v858 = vunpack.c.l.b16 %v507
  %v859 = vunpack.c.h.b16 %v507
  %v860 = vunpack.c.l.b16 %v508
  %v861 = vunpack.c.h.b16 %v508
  %v862 = vunpack.c.l.b16 %v509
  %v863 = vunpack.c.l.b16 %v510
  %v864 = vunpack.c.h.b16 %v510
  %v865 = vunpack.c.l.b16 %v511
  %v866 = vunpack.c.h.b16 %v511
  %v867 = vunpack.c.l.b16 %v512
  %v868 = vunpack.c.h.b16 %v512
  %v869 = vunpack.c.l.b16 %v513
  %v870 = vunpack.c.l.b16 %v514
  %v871 = vunpack.c.h.b16 %v514
  %v872 = vunpack.c.l.b16 %v515
  %v873 = vunpack.c.h.b16 %v515
  %v874 = vunpack.c.l.b16 %v516
  %v875 = vunpack.c.h.b16 %v516
  %v876 = vunpack.c.l.b16 %v517
  %v877 = vunpack.c.l.b16 %v518
  %v878 = vunpack.c.h.b16 %v518
  %v879 = vunpack.c.l.b16 %v519
  %v880 = vunpack.c.h.b16 %v519
  %v881 = vunpack.c.l.b16 %v520
  %v882 = vunpack.c.h.b16 %v520
  %v883 = vunpack.c.l.b16 %v521
  %v884 = vunpack.c.l.b16 %v522
  %v885 = vunpack.c.h.b16 %v522
  %v886 = vunpack.c.l.b16 %v523
  %v887 = vunpack.c.h.b16 %v523
  %v888 = vunpack.c.l.b16 %v524
  %v889 = vunpack.c.h.b16 %v524
  %v890 = vunpack.c.l.b16 %v525
  %v891 = vunpack.c.l.b16 %v526
  %v892 = vunpack.c.h.b16 %v526
  %v893 = vunpack.c.l.b16 %v527
  %v894 = vunpack.c.h.b16 %v527
  %v895 = vunpack.c.l.b16 %v528
  %v896 = vunpack.c.h.b16 %v528
  %v897 = vunpack.c.l.b16 %v529
  %v898 = vunpack.c.l.b16 %v530
  %v899 = vunpack.c.h.b16 %v530
  %v900 = vunpack.c.l.b16 %v531
  %v901 = vunpack.c.h.b16 %v531
  %v902 = vunpack.c.l.b16 %v532
  %v903 = vunpack.c.h.b16 %v532
  %v904 = vunpack.c.l.b16 %v533
  %v905 = vunpack.c.l.b16 %v534
  %v906 = vunpack.c.h.b16 %v534
  %v907 = vunpack.c.l.b16 %v535
  %v908 = vunpack.c.h.b16 %v535
  %v909 = vunpack.c.l.b16 %v536
  %v910 = vunpack.c.h.b16 %v536
  %v911 = vunpack.c.l.b16 %v537
  %v912 = vunpack.c.l.b16 %v538
  %v913 = vunpack.c.h.b16 %v538
  %v914 = vunpack.c.l.b16 %v539
  %v915 = vunpack.c.h.b16 %v539
  %v916 = vunpack.c.l.b16 %v540
  %v917 = vunpack.c.h.b16 %v540
  %v918 = vunpack.c.l.b16 %v541
  %v919 = vunpack.c.l.b16 %v542
  %v920 = vunpack.c.h.b16 %v542
  %v921 = vunpack.c.l.b16 %v543
  %v922 = vunpack.c.h.b16 %v543
  %v923 = vunpack.c.l.b16 %v544
  %v924 = vunpack.c.h.b16 %v544
  %v925 = vunpack.c.l.b16 %v545
  %v926 = vunpack.c.l.b16 %v546
  %v927 = vunpack.c.h.b16 %v546
  %v928 = vunpack.c.l.b16 %v547
  %v929 = vunpack.c.h.b16 %v547
  %v930 = vunpack.c.l.b16 %v548
  %v931 = vunpack.c.h.b16 %v548
  %v932 = vunpack.c.l.b16 %v549
  %v933 = vunpack.c.l.b16 %v550
  %v934 = vunpack.c.h.b16 %v550
  %v935 = vunpack.c.l.b16 %v551
  %v936 = vunpack.c.h.b16 %v551
  %v937 = vunpack.c.l.b16 %v552
  %v938 = vunpack.c.h.b16 %v552
  %v939 = vunpack.c.l.b16 %v553
  %v940 = vunpack.c.l.b16 %v554
  %v941 = vunpack.c.h.b16 %v554
  %v942 = vunpack.c.l.b16 %v555
  %v943 = vunpack.c.h.b16 %v555
  %v944 = vunpack.c.l.b16 %v556
  %v945 = vunpack.c.h.b16 %v556
  %v946 = vunpack.c.l.b16 %v557
  %v947 = vpack.c.b16 %v730, %v723
  %v948 = vpack.c.b16 %v731, %v724
  %v949 = vpack.c.b16 %v732, %v725
  %v950 = vpack.c.b16 %v733, %v726
  %v951 = vpack.c.b16 %v734, %v727
  %v952 = vpack.c.b16 %v735, %v728
  %v953 = vpack.c.b16 %v736, %v729
  %v954 = vpack.c.b16 %v744, %v737
  %v955 = vpack.c.b16 %v745, %v738
  %v956 = vpack.c.b16 %v746, %v739
  %v957 = vpack.c.b16 %v747, %v740
  %v958 = vpack.c.b16 %v748, %v741
  %v959 = vpack.c.b16 %v749, %v742
  %v960 = vpack.c.b16 %v750, %v743
  %v961 = vpack.c.b16 %v758, %v751
  %v962 = vpack.c.b16 %v759, %v752
  %v963 = vpack.c.b16 %v760, %v753
  %v964 = vpack.c.b16 %v761, %v754
  %v965 = vpack.c.b16 %v762, %v755
  %v966 = vpack.c.b16 %v763, %v756
  %v967 = vpack.c.b16 %v764, %v757
  %v968 = vpack.c.b16 %v772, %v765
  %v969 = vpack.c.b16 %v773, %v766
  %v970 = vpack.c.b16 %v774, %v767
  %v971 = vpack.c.b16 %v775, %v768
  %v972 = vpack.c.b16 %v776, %v769
  %v973 = vpack.c.b16 %v777, %v770
  %v974 = vpack.c.b16 %v778, %v771
  %v975 = vpack.c.b16 %v786, %v779
  %v976 = vpack.c.b16 %v787, %v780
  %v977 = vpack.c.b16 %v788, %v781
  %v978 = vpack.c.b16 %v789, %v782
  %v979 = vpack.c.b16 %v790, %v783
  %v980 = vpack.c.b16 %v791, %v784
  %v981 = vpack.c.b16 %v792, %v785
  %v982 = vpack.c.b16 %v800, %v793
  %v983 = vpack.c.b16 %v801, %v794
  %v984 = vpack.c.b16 %v802, %v795
  %v985 = vpack.c.b16 %v803, %v796
  %v986 = vpack.c.b16 %v804, %v797
  %v987 = vpack.c.b16 %v805, %v798
  %v988 = vpack.c.b16 %v806, %v799
  %v989 = vpack.c.b16 %v814, %v807
  %v990 = vpack.c.b16 %v815, %v808
  %v991 = vpack.c.b16 %v816, %v809
  %v992 = vpack.c.b16 %v817, %v810
  %v993 = vpack.c.b16 %v818, %v811
  %v994 = vpack.c.b16 %v819, %v812
  %v995 = vpack.c.b16 %v820, %v813
  %v996 = vpack.c.b16 %v828, %v821
  %v997 = vpack.c.b16 %v829, %v822
  %v998 = vpack.c.b16 %v830, %v823
  %v999 = vpack.c.b16 %v831, %v824
  %v1000 = vpack.c.b16 %v832, %v825
  %v1001 = vpack.c.b16 %v833, %v826
  %v1002 = vpack.c.b16 %v834, %v827
  %v1003 = vpack.c.b16 %v842, %v835
  %v1004 = vpack.c.b16 %v843, %v836
  %v1005 = vpack.c.b16 %v844, %v837
  %v1006 = vpack.c.b16 %v845, %v838
  %v1007 = vpack.c.b16 %v846, %v839
  %v1008 = vpack.c.b16 %v847, %v840
  %v1009 = vpack.c.b16 %v848, %v841
  %v1010 = vpack.c.b16 %v856, %v849
  %v1011 = vpack.c.b16 %v857, %v850
  %v1012 = vpack.c.b16 %v858, %v851
  %v1013 = vpack.c.b16 %v859, %v852
  %v1014 = vpack.c.b16 %v860, %v853
  %v1015 = vpack.c.b16 %v861, %v854
  %v1016 = vpack.c.b16 %v862, %v855
  %v1017 = vpack.c.b16 %v870, %v863
  %v1018 = vpack.c.b16 %v871, %v864
  %v1019 = vpack.c.b16 %v872, %v865
  %v1020 = vpack.c.b16 %v873, %v866
  %v1021 = vpack.c.b16 %v874, %v867
  %v1022 = vpack.c.b16 %v875, %v868
  %v1023 = vpack.c.b16 %v876, %v869
  %v1024 = vpack.c.b16 %v884, %v877
  %v1025 = vpack.c.b16 %v885, %v878
  %v1026 = vpack.c.b16 %v886, %v879
  %v1027 = vpack.c.b16 %v887, %v880
  %v1028 = vpack.c.b16 %v888, %v881
  %v1029 = vpack.c.b16 %v889, %v882
  %v1030 = vpack.c.b16 %v890, %v883
  %v1031 = vpack.c.b16 %v898, %v891
  %v1032 = vpack.c.b16 %v899, %v892
  %v1033 = vpack.c.b16 %v900, %v893
  %v1034 = vpack.c.b16 %v901, %v894
  %v1035 = vpack.c.b16 %v902, %v895
  %v1036 = vpack.c.b16 %v903, %v896
  %v1037 = vpack.c.b16 %v904, %v897
  %v1038 = vpack.c.b16 %v912, %v905
  %v1039 = vpack.c.b16 %v913, %v906
  %v1040 = vpack.c.b16 %v914, %v907
  %v1041 = vpack.c.b16 %v915, %v908
  %v1042 = vpack.c.b16 %v916, %v909
  %v1043 = vpack.c.b16 %v917, %v910
  %v1044 = vpack.c.b16 %v918, %v911
  %v1045 = vpack.c.b16 %v926, %v919
  %v1046 = vpack.c.b16 %v927, %v920
  %v1047 = vpack.c.b16 %v928, %v921
  %v1048 = vpack.c.b16 %v929, %v922
  %v1049 = vpack.c.b16 %v930, %v923
  %v1050 = vpack.c.b16 %v931, %v924
  %v1051 = vpack.c.b16 %v932, %v925
  %v1052 = vpack.c.b16 %v940, %v933
  %v1053 = vpack.c.b16 %v941, %v934
  %v1054 = vpack.c.b16 %v942, %v935
  %v1055 = vpack.c.b16 %v943, %v936
  %v1056 = vpack.c.b16 %v944, %v937
  %v1057 = vpack.c.b16 %v945, %v938
  %v1058 = vpack.c.b16 %v946, %v939
  %1171 = vmatprep.subr.bf16.mxu0 %v948
  %1172 = vmatpush1.bf16.msra.mxu0 %v947
  %1173 = vmatprep.subr.bf16.mxu0 %v955
  %1174 = vmatpush1.bf16.msra.mxu0 %v954
  %1175 = vmatprep.subr.bf16.mxu0 %v962
  %1176 = vmatpush1.bf16.msra.mxu0 %v961
  %1177 = vmatprep.subr.bf16.mxu0 %v969
  %1178 = vmatpush1.bf16.msra.mxu0 %v968
  %1179 = vmatprep.subr.bf16.mxu0 %v976
  %1180 = vmatpush1.bf16.msra.mxu0 %v975
  %1181 = vmatprep.subr.bf16.mxu0 %v983
  %1182 = vmatpush1.bf16.msra.mxu0 %v982
  %1183 = vmatprep.subr.bf16.mxu0 %v990
  %1184 = vmatpush1.bf16.msra.mxu0 %v989
  %1185 = vmatprep.subr.bf16.mxu0 %v997
  %1186 = vmatpush1.bf16.msra.mxu0 %v996
  %1187 = vmatprep.subr.bf16.mxu0 %v1004
  %1188 = vmatpush1.bf16.msra.mxu0 %v1003
  %1189 = vmatprep.subr.bf16.mxu0 %v1011
  %1190 = vmatpush1.bf16.msra.mxu0 %v1010
  %1191 = vmatprep.subr.bf16.mxu0 %v1018
  %1192 = vmatpush1.bf16.msra.mxu0 %v1017
  %1193 = vmatprep.subr.bf16.mxu0 %v1025
  %1194 = vmatpush1.bf16.msra.mxu0 %v1024
  %1195 = vmatprep.subr.bf16.mxu0 %v1032
  %1196 = vmatpush1.bf16.msra.mxu0 %v1031
  %1197 = vmatprep.subr.bf16.mxu0 %v1039
  %1198 = vmatpush1.bf16.msra.mxu0 %v1038
  %1199 = vmatprep.subr.bf16.mxu0 %v1046
  %1200 = vmatpush1.bf16.msra.mxu0 %v1045
  %1201 = vmatprep.subr.bf16.mxu0 %v1053
  %1202 = vmatpush1.bf16.msra.mxu0 %v1052
  %1203 = vmatprep.mubr.bf16.mxu0 %v429
  %1204 = vmatmul.mubr.bf16.gmra.mrb[0].mxu0 %v428
  %v1205 = vpop.f32.mrb[0].mxu0
  %v1206 = vadd.f32 %v563, %v1205
  %v1207 = vpop.f32.mrb[0].mxu0
  %v1208 = vadd.f32 %v567, %v1207
  %v1209 = vpop.f32.mrb[0].mxu0
  %v1210 = vpop.f32.mrb[0].mxu0
  %1211 = vdwg.mxu0
  %1212 = vmatprep.subr.bf16.mxu0 %v950
  %1213 = vmatpush1.bf16.msra.mxu0 %v949
  %1214 = vmatprep.subr.bf16.mxu0 %v957
  %1215 = vmatpush1.bf16.msra.mxu0 %v956
  %1216 = vmatprep.subr.bf16.mxu0 %v964
  %1217 = vmatpush1.bf16.msra.mxu0 %v963
  %1218 = vmatprep.subr.bf16.mxu0 %v971
  %1219 = vmatpush1.bf16.msra.mxu0 %v970
  %1220 = vmatprep.subr.bf16.mxu0 %v978
  %1221 = vmatpush1.bf16.msra.mxu0 %v977
  %1222 = vmatprep.subr.bf16.mxu0 %v985
  %1223 = vmatpush1.bf16.msra.mxu0 %v984
  %1224 = vmatprep.subr.bf16.mxu0 %v992
  %1225 = vmatpush1.bf16.msra.mxu0 %v991
  %1226 = vmatprep.subr.bf16.mxu0 %v999
  %1227 = vmatpush1.bf16.msra.mxu0 %v998
  %1228 = vmatprep.subr.bf16.mxu0 %v1006
  %1229 = vmatpush1.bf16.msra.mxu0 %v1005
  %1230 = vmatprep.subr.bf16.mxu0 %v1013
  %1231 = vmatpush1.bf16.msra.mxu0 %v1012
  %1232 = vmatprep.subr.bf16.mxu0 %v1020
  %1233 = vmatpush1.bf16.msra.mxu0 %v1019
  %1234 = vmatprep.subr.bf16.mxu0 %v1027
  %1235 = vmatpush1.bf16.msra.mxu0 %v1026
  %1236 = vmatprep.subr.bf16.mxu0 %v1034
  %1237 = vmatpush1.bf16.msra.mxu0 %v1033
  %1238 = vmatprep.subr.bf16.mxu0 %v1041
  %1239 = vmatpush1.bf16.msra.mxu0 %v1040
  %1240 = vmatprep.subr.bf16.mxu0 %v1048
  %1241 = vmatpush1.bf16.msra.mxu0 %v1047
  %1242 = vmatprep.subr.bf16.mxu0 %v1055
  %1243 = vmatpush1.bf16.msra.mxu0 %v1054
  %1244 = vmatprep.mubr.bf16.mxu0 %v429
  %1245 = vmatmul.mubr.bf16.gmra.mrb[0].mxu0 %v428
  %v1246 = vpop.f32.mrb[0].mxu0
  %v1247 = vadd.f32 %v571, %v1246
  %v1248 = vpop.f32.mrb[0].mxu0
  %v1249 = vadd.f32 %v575, %v1248
  %v1250 = vpop.f32.mrb[0].mxu0
  %v1251 = vpop.f32.mrb[0].mxu0
  %1252 = vdwg.mxu0
  %1253 = vmatprep.subr.bf16.mxu0 %v952
  %1254 = vmatpush1.bf16.msra.mxu0 %v951
  %1255 = vmatprep.subr.bf16.mxu0 %v959
  %1256 = vmatpush1.bf16.msra.mxu0 %v958
  %1257 = vmatprep.subr.bf16.mxu0 %v966
  %1258 = vmatpush1.bf16.msra.mxu0 %v965
  %1259 = vmatprep.subr.bf16.mxu0 %v973
  %1260 = vmatpush1.bf16.msra.mxu0 %v972
  %1261 = vmatprep.subr.bf16.mxu0 %v980
  %1262 = vmatpush1.bf16.msra.mxu0 %v979
  %1263 = vmatprep.subr.bf16.mxu0 %v987
  %1264 = vmatpush1.bf16.msra.mxu0 %v986
  %1265 = vmatprep.subr.bf16.mxu0 %v994
  %1266 = vmatpush1.bf16.msra.mxu0 %v993
  %1267 = vmatprep.subr.bf16.mxu0 %v1001
  %1268 = vmatpush1.bf16.msra.mxu0 %v1000
  %1269 = vmatprep.subr.bf16.mxu0 %v1008
  %1270 = vmatpush1.bf16.msra.mxu0 %v1007
  %1271 = vmatprep.subr.bf16.mxu0 %v1015
  %1272 = vmatpush1.bf16.msra.mxu0 %v1014
  %1273 = vmatprep.subr.bf16.mxu0 %v1022
  %1274 = vmatpush1.bf16.msra.mxu0 %v1021
  %1275 = vmatprep.subr.bf16.mxu0 %v1029
  %1276 = vmatpush1.bf16.msra.mxu0 %v1028
  %1277 = vmatprep.subr.bf16.mxu0 %v1036
  %1278 = vmatpush1.bf16.msra.mxu0 %v1035
  %1279 = vmatprep.subr.bf16.mxu0 %v1043
  %1280 = vmatpush1.bf16.msra.mxu0 %v1042
  %1281 = vmatprep.subr.bf16.mxu0 %v1050
  %1282 = vmatpush1.bf16.msra.mxu0 %v1049
  %1283 = vmatprep.subr.bf16.mxu0 %v1057
  %1284 = vmatpush1.bf16.msra.mxu0 %v1056
  %1285 = vmatprep.mubr.bf16.mxu0 %v429
  %1286 = vmatmul.mubr.bf16.gmra.mrb[0].mxu0 %v428
  %v1287 = vpop.f32.mrb[0].mxu0
  %v1288 = vadd.f32 %v579, %v1287
  %v1289 = vpop.f32.mrb[0].mxu0
  %v1290 = vadd.f32 %v583, %v1289
  %v1291 = vpop.f32.mrb[0].mxu0
  %v1292 = vpop.f32.mrb[0].mxu0
  %1293 = vdwg.mxu0
  %1294 = vmatprep.subr.bf16.mxu0 0
  %1295 = vmatpush1.bf16.msra.mxu0 %v953
  %1296 = vmatprep.subr.bf16.mxu0 0
  %1297 = vmatpush1.bf16.msra.mxu0 %v960
  %1298 = vmatprep.subr.bf16.mxu0 0
  %1299 = vmatpush1.bf16.msra.mxu0 %v967
  %1300 = vmatprep.subr.bf16.mxu0 0
  %1301 = vmatpush1.bf16.msra.mxu0 %v974
  %1302 = vmatprep.subr.bf16.mxu0 0
  %1303 = vmatpush1.bf16.msra.mxu0 %v981
  %1304 = vmatprep.subr.bf16.mxu0 0
  %1305 = vmatpush1.bf16.msra.mxu0 %v988
  %1306 = vmatprep.subr.bf16.mxu0 0
  %1307 = vmatpush1.bf16.msra.mxu0 %v995
  %1308 = vmatprep.subr.bf16.mxu0 0
  %1309 = vmatpush1.bf16.msra.mxu0 %v1002
  %1310 = vmatprep.subr.bf16.mxu0 0
  %1311 = vmatpush1.bf16.msra.mxu0 %v1009
  %1312 = vmatprep.subr.bf16.mxu0 0
  %1313 = vmatpush1.bf16.msra.mxu0 %v1016
  %1314 = vmatprep.subr.bf16.mxu0 0
  %1315 = vmatpush1.bf16.msra.mxu0 %v1023
  %1316 = vmatprep.subr.bf16.mxu0 0
  %1317 = vmatpush1.bf16.msra.mxu0 %v1030
  %1318 = vmatprep.subr.bf16.mxu0 0
  %1319 = vmatpush1.bf16.msra.mxu0 %v1037
  %1320 = vmatprep.subr.bf16.mxu0 0
  %1321 = vmatpush1.bf16.msra.mxu0 %v1044
  %1322 = vmatprep.subr.bf16.mxu0 0
  %1323 = vmatpush1.bf16.msra.mxu0 %v1051
  %1324 = vmatprep.subr.bf16.mxu0 0
  %1325 = vmatpush1.bf16.msra.mxu0 %v1058
  %1326 = vmatprep.mubr.bf16.mxu0 %v429
  %1327 = vmatmul.mubr.bf16.gmra.mrb[0].mxu0 %v428
  %v1328 = vpop.f32.mrb[0].mxu0
  %v1329 = vadd.f32 %v587, %v1328
  %v1330 = vpop.f32.mrb[0].mxu0
  %v1331 = vpop.f32.mrb[0].mxu0
  %v1332 = vpop.f32.mrb[0].mxu0
  %1333 = vdwg.mxu0
  %v1334 = vtanh.pop %v1206
  %v1335 = vtanh.pop %v1208
  %v1336 = vtanh.pop %v1247
  %v1337 = vtanh.pop %v1249
  %v1338 = vtanh.pop %v1288
  %v1339 = vtanh.pop %v1290
  %v1340 = vtanh.pop %v1329
  %1341 = vst [vmem:[%s7] sm:$0xff] %v1334
  %1342 = vst [vmem:[%s7 + $0x8] sm:$0xff] %v1335
  %1343 = vst [vmem:[%s7 + $0x10] sm:$0xff] %v1336
  %1344 = vst [vmem:[%s7 + $0x18] sm:$0xff] %v1337
  %1345 = vst [vmem:[%s7 + $0x20] sm:$0xff] %v1338
  %1346 = vst [vmem:[%s7 + $0x28] sm:$0xff] %v1339
  %1347 = vst [vmem:[%s7 + $0x30] sm:$0xff] %v1340
  // Predicated region
  $region30: #{generator_forward.1} parent=0 // pred_check
    _
  $region31: #{generator_forward.1} parent=0 // pred_check_branch
    %1349 = sbr.rel (0) target = $region33
  $region32: #{generator_forward.1} parent=0 // pred_region
    _
  $region33: #{generator_forward.1} parent=0 // pred_fallthru
    _
  // Predicated region
  $region34: #{generator_forward.1} parent=0 // pred_check
    _
  $region35: #{generator_forward.1} parent=0 // pred_check_branch
    %1351 = sbr.rel (0) target = $region37
  $region36: #{generator_forward.1} parent=0 // pred_region
    _
  $region37: #{generator_forward.1} parent=0 // pred_fallthru
    _

</llo_original>
